<compile_context>
chip_gen: v5e
topology: v5e:2x2
jax: 0.10.0
libtpu: 0.0.40
codegen_flags: <defaults>
</compile_context>

<pallas_src>
import functools

import jax
import jax.numpy as jnp
from jax.experimental import pallas as pl
from jax.experimental.pallas import tpu as pltpu


def _round_up(x, m):
    return ((x + m - 1) // m) * m


# ----------------------------------------------------------------------------
# Stand-in "student_model": deterministic linear pooler producing (rows, H).
# TODO(synk): the real module runs a pretrained HF transformer (AutoModel);
# a full transformer forward is not translated here.
# ----------------------------------------------------------------------------
def _encoder_kernel(x_ref, w_ref, b_ref, o_ref):
    acc = jnp.dot(x_ref[...], w_ref[...], preferred_element_type=jnp.float32)
    o_ref[...] = (acc + b_ref[...]).astype(o_ref.dtype)


def encoder_stub(x, w, b, *, tile_rows=512):
    """bf16-in / bf16-out linear pooler; fp32 MXU accumulation."""
    rows, din = x.shape
    h = w.shape[1]
    x = x.astype(jnp.bfloat16)            # no-op if already bf16
    w = w.astype(jnp.bfloat16)            # one-time parameter cast, outside kernel
    b = b.astype(jnp.float32)
    tr = min(_round_up(tile_rows, 8), _round_up(rows, 8))
    rows_pad = _round_up(rows, tr)
    if rows_pad != rows:
        x = jnp.pad(x, ((0, rows_pad - rows), (0, 0)))
    out = pl.pallas_call(
        _encoder_kernel,
        grid=(rows_pad // tr,),
        out_shape=jax.ShapeDtypeStruct((rows_pad, h), jnp.bfloat16),
        in_specs=[
            pl.BlockSpec((tr, din), lambda i: (i, 0)),
            pl.BlockSpec((din, h), lambda i: (0, 0)),
            pl.BlockSpec((1, h), lambda i: (0, 0)),
        ],
        out_specs=pl.BlockSpec((tr, h), lambda i: (i, 0)),
        compiler_params=pltpu.CompilerParams(dimension_semantics=("parallel",)),
    )(x, w, b)
    return out[:rows]


# ----------------------------------------------------------------------------
# Prologue: L2-normalise the key and fold the logit scale into it -> bf16.
# O(N*H) once, so the hot loss kernel never touches fp32 key data.
# ----------------------------------------------------------------------------
def _keyprep_kernel(scale_ref, key_ref, o_ref, *, use_exp):
    k = key_ref[...].astype(jnp.float32)
    inv = jax.lax.rsqrt(jnp.sum(k * k, axis=-1, keepdims=True) + 1e-12)
    s = scale_ref[0]
    if use_exp:                      # temp <= 5.01 branch (static)
        s = jnp.exp(s)
    o_ref[...] = (k * (inv * s)).astype(o_ref.dtype)


def _prep_key(key, logit_scale, use_exp):
    n, h = key.shape
    return pl.pallas_call(
        functools.partial(_keyprep_kernel, use_exp=use_exp),
        grid=(1,),
        out_shape=jax.ShapeDtypeStruct((n, h), jnp.bfloat16),
        in_specs=[
            pl.BlockSpec(memory_space=pltpu.MemorySpace.SMEM),   # logit_scale
            pl.BlockSpec((n, h), lambda i: (0, 0)),
        ],
        out_specs=pl.BlockSpec((n, h), lambda i: (0, 0)),
    )(logit_scale, key)


# ----------------------------------------------------------------------------
# Contrastive NLI loss: streamed scaled similarity + online logsumexp.
# grid = (n_split "parallel", tiles_per_split "arbitrary")
#   - query is streamed in bf16 (TM, H) tiles; each tile is row-normalised in
#     fp32, cast to bf16, written back (fused queue normalisation) and fed to
#     the MXU against the resident scale-folded bf16 key.
#   - per-core running (max, sum, diag) live in the per-core fp32 output
#     blocks (index constant along the arbitrary axis -> resident accumulator).
# ----------------------------------------------------------------------------
def _nli_kernel(key_ref, query_ref, m_ref, l_ref, d_ref, qn_ref,
                *, n, tm, tiles_per_split, m_valid, m_pad):
    j = pl.program_id(1)
    col0 = (pl.program_id(0) * tiles_per_split + j) * tm   # first global column

    @pl.when(j == 0)
    def _init():
        m_ref[...] = jnp.full(m_ref.shape, -jnp.inf, jnp.float32)
        l_ref[...] = jnp.zeros(l_ref.shape, jnp.float32)
        d_ref[...] = jnp.zeros(d_ref.shape, jnp.float32)

    # Normalise this query tile (fp32 rsqrt -> EUP slot), emit bf16.
    q = query_ref[...].astype(jnp.float32)
    q_n = q * jax.lax.rsqrt(jnp.sum(q * q, axis=-1, keepdims=True) + 1e-12)
    q_bf = q_n.astype(jnp.bfloat16)
    qn_ref[...] = q_bf                                     # fused row-norm output

    # scores = (scale * key_n) @ q_n^T -> (N, TM), fp32 MXU accumulation.
    scores = jax.lax.dot_general(
        key_ref[...], q_bf, (((1,), (1,)), ((), ())),
        preferred_element_type=jnp.float32)

    if m_pad > m_valid:   # static: zero-padded query columns exist somewhere
        col = jax.lax.broadcasted_iota(jnp.int32, (1, tm), 1) + col0
        scores = jnp.where(col < m_valid, scores, -1e30)

    # Diagonal (positive) scores from the same bf16 path as the lse; only
    # tiles overlapping columns [0, n) do any work.
    @pl.when(col0 < n)
    def _diag():
        col = jax.lax.broadcasted_iota(jnp.int32, (n, tm), 1) + col0
        row = jax.lax.broadcasted_iota(jnp.int32, (n, tm), 0)
        d_ref[...] += jnp.sum(jnp.where(col == row, scores, 0.0),
                              axis=-1, keepdims=True)

    # Online logsumexp update (fp32 stats in the resident per-core output).
    m_prev = m_ref[...]
    m_new = jnp.maximum(m_prev, jnp.max(scores, axis=-1, keepdims=True))
    alpha = jnp.exp(m_prev - m_new)
    l_ref[...] = alpha * l_ref[...] + jnp.sum(jnp.exp(scores - m_new),
                                              axis=-1, keepdims=True)
    m_ref[...] = m_new


def mynli_forward(features, queue, logit_scale, *, temp, queue_len,
                  tm=512, n_split=2):
    """features: (batch*3, H) pooled encoder outputs (bf16); queue: (Q, H)."""
    h = features.shape[-1]
    feats = features.reshape(-1, 3, h)

    # TODO(synk): dist.all_gather is the single-device identity here.
    key = feats[:, 0]
    query = jnp.concatenate(
        [feats[:, 1], feats[:, 2], queue.astype(feats.dtype)], axis=0)

    n, m = key.shape[0], query.shape[0]
    use_exp = temp <= 5.01

    # Prologue: scale-folded, normalised bf16 key (resident block of the loss).
    key_n = _prep_key(key, logit_scale.astype(jnp.float32), use_exp)

    # M-axis tiling: bf16 stream, wide tiles; optional 2-way split across
    # TensorCores (leading "parallel" axis -- a no-op on single-core chips).
    tm = max(8, min(_round_up(tm, 8), _round_up(m, 8)))
    n_split = max(1, min(n_split, pl.cdiv(m, tm)))
    tiles_per_split = pl.cdiv(pl.cdiv(m, n_split), tm)
    m_pad = n_split * tiles_per_split * tm
    query_p = jnp.pad(query, ((0, m_pad - m), (0, 0))) if m_pad != m else query

    part_spec = pl.BlockSpec((None, n, 1), lambda c, j: (c, 0, 0))
    m_p, l_p, d_p, qn = pl.pallas_call(
        functools.partial(_nli_kernel, n=n, tm=tm,
                          tiles_per_split=tiles_per_split,
                          m_valid=m, m_pad=m_pad),
        grid=(n_split, tiles_per_split),
        out_shape=(
            jax.ShapeDtypeStruct((n_split, n, 1), jnp.float32),   # running max
            jax.ShapeDtypeStruct((n_split, n, 1), jnp.float32),   # running sum
            jax.ShapeDtypeStruct((n_split, n, 1), jnp.float32),   # diag scores
            jax.ShapeDtypeStruct((m_pad, h), jnp.bfloat16),       # normalised query
        ),
        in_specs=[
            pl.BlockSpec((n, h), lambda c, j: (0, 0)),            # key (bf16, resident)
            pl.BlockSpec((tm, h),
                         lambda c, j: (c * tiles_per_split + j, 0)),  # query stream
        ],
        out_specs=(
            part_spec, part_spec, part_spec,
            pl.BlockSpec((tm, h), lambda c, j: (c * tiles_per_split + j, 0)),
        ),
        compiler_params=pltpu.CompilerParams(
            dimension_semantics=("parallel", "arbitrary"),
            vmem_limit_bytes=48 * 1024 * 1024),
    )(key_n, query_p)

    # Tiny O(n_split * N) epilogue: combine per-core partials into the CE loss.
    lse = jax.nn.logsumexp(m_p + jnp.log(l_p), axis=0)   # (N, 1)
    pos = jnp.sum(d_p, axis=0)                           # (N, 1)
    loss = jnp.mean(lse - pos)

    # queue = query[: M - max(M - queue_len, 0)] — the normalised bf16 rows
    # were already written by the loss kernel, just slice them.
    keep = m - max(m - queue_len, 0)
    new_queue = qn[:keep]
    return loss, new_queue, logit_scale


if __name__ == "__main__":
    # Small deterministic shapes chosen to exercise every code path:
    #   N = 20 keys (diagonal spans two 16-wide query tiles),
    #   M = 2*20 + 37 = 77 query rows -> 2 cores x 3 tiles x 16 = 96 padded
    #   (padded-column mask + a fully-padded tail tile), keep = 37 queue rows.
    key0 = jax.random.PRNGKey(0)
    k_x, k_w, k_b, k_q = jax.random.split(key0, 4)

    n_triplets = 20
    d_in = 32
    hidden = 128
    queue_len = 37
    temp = 0.05

    x = jax.random.normal(k_x, (n_triplets * 3, d_in),
                          dtype=jnp.float32).astype(jnp.bfloat16)
    w_enc = jax.random.normal(k_w, (d_in, hidden), dtype=jnp.float32) * 0.05
    b_enc = jax.random.normal(k_b, (1, hidden), dtype=jnp.float32) * 0.01
    queue = jax.random.normal(k_q, (queue_len, hidden),
                              dtype=jnp.float32).astype(jnp.bfloat16)
    logit_scale = jnp.array([temp], dtype=jnp.float32)   # nn.Parameter(tensor([temp]))

    # "student_model" pooled features (stand-in encoder, runs as a Pallas matmul).
    features = encoder_stub(x, w_enc, b_enc)

    loss, new_queue, scale_out = mynli_forward(
        features, queue, logit_scale, temp=temp, queue_len=queue_len,
        tm=16, n_split=2)
    jax.block_until_ready((loss, new_queue, scale_out))

    # Pure-JAX fp32 reference of the same forward (built from the same bf16
    # features), used as a loose numerical cross-check of the bf16 kernel.
    f32 = features.astype(jnp.float32).reshape(-1, 3, hidden)
    key_r = f32[:, 0]
    query_r = jnp.concatenate(
        [f32[:, 1], f32[:, 2], queue.astype(jnp.float32)], axis=0)
    key_r = key_r / jnp.linalg.norm(key_r, axis=-1, keepdims=True)
    query_r = query_r / jnp.linalg.norm(query_r, axis=-1, keepdims=True)
    scale = jnp.exp(logit_scale[0]) if temp <= 5.01 else logit_scale[0]
    scores_r = scale * (key_r @ query_r.T)
    lse_r = jax.nn.logsumexp(scores_r, axis=-1)
    idx = jnp.arange(n_triplets)
    loss_r = jnp.mean(lse_r - scores_r[idx, idx])

    m_total = 2 * n_triplets + queue_len
    keep = m_total - max(m_total - queue_len, 0)
    assert loss.shape == ()
    assert new_queue.shape == (keep, hidden)
    assert bool(jnp.isfinite(loss))
    assert abs(float(loss) - float(loss_r)) < 5e-2, (float(loss), float(loss_r))
    assert float(jnp.max(jnp.abs(new_queue.astype(jnp.float32)
                                 - query_r[:keep]))) < 2e-2
    print("KERNEL_OK")
</pallas_src>

<mosaic_0001>
module attributes {stable_mosaic.version = 11 : i64} {
  func.func @_encoder_kernel(%arg0: i32, %arg1: memref<64x32xbf16, #tpu.memory_space<vmem>>, %arg2: memref<32x128xbf16, #tpu.memory_space<vmem>>, %arg3: memref<1x128xf32, #tpu.memory_space<vmem>>, %arg4: memref<64x128xbf16, #tpu.memory_space<vmem>>) attributes {dimension_semantics = [#tpu.dimension_semantics<parallel>], iteration_bounds = array<i64: 1>, scalar_prefetch = 0 : i64, scratch_operands = 0 : i64, tpu.core_type = #tpu.core_type<tc>, window_params = [{transform_indices = @transform_0, window_bounds = array<i64: 64, 32>}, {pipeline_mode = #tpu.pipeline_mode<synchronous>, transform_indices = @transform_1, window_bounds = array<i64: 32, 128>}, {pipeline_mode = #tpu.pipeline_mode<synchronous>, transform_indices = @transform_2, window_bounds = array<i64: 1, 128>}, {transform_indices = @transform_3, window_bounds = array<i64: 64, 128>}]} {
    %c0 = arith.constant 0 : index
    %c0_0 = arith.constant 0 : index
    %0 = vector.load %arg1[%c0, %c0_0] : memref<64x32xbf16, #tpu.memory_space<vmem>>, vector<64x32xbf16>
    %c0_1 = arith.constant 0 : index
    %c0_2 = arith.constant 0 : index
    %1 = vector.load %arg2[%c0_1, %c0_2] : memref<32x128xbf16, #tpu.memory_space<vmem>>, vector<32x128xbf16>
    %cst = arith.constant dense<0.000000e+00> : vector<64x128xf32>
    %2 = tpu.matmul %0, %1, %cst {dimension_numbers = #tpu.dot_dimension_numbers<[1], [0], [0], [1], [0, 0, 1, 1], [], []>} : vector<64x32xbf16>, vector<32x128xbf16>, vector<64x128xf32> -> vector<64x128xf32>
    %c0_3 = arith.constant 0 : index
    %c0_4 = arith.constant 0 : index
    %3 = vector.load %arg3[%c0_3, %c0_4] : memref<1x128xf32, #tpu.memory_space<vmem>>, vector<1x128xf32>
    %4 = vector.broadcast %3 : vector<1x128xf32> to vector<64x128xf32>
    %5 = arith.addf %2, %4 : vector<64x128xf32>
    %6 = arith.truncf %5 : vector<64x128xf32> to vector<64x128xbf16>
    %c0_5 = arith.constant 0 : index
    %c0_6 = arith.constant 0 : index
    %7 = vector.load %arg4[%c0_5, %c0_6] : memref<64x128xbf16, #tpu.memory_space<vmem>>, vector<64x128xbf16>
    tpu.vector_store %arg4[%c0_5, %c0_6], %6 {strides = array<i32>} : memref<64x128xbf16, #tpu.memory_space<vmem>>, vector<64x128xbf16>,
    return
  }
  func.func @transform_0(%arg0: i32) -> (i32, i32) {
    %c0_i32 = arith.constant 0 : i32
    %c0_i32_0 = arith.constant 0 : i32
    return %arg0, %c0_i32 : i32, i32
  }
  func.func @transform_1(%arg0: i32) -> (i32, i32) {
    %c0_i32 = arith.constant 0 : i32
    %c0_i32_0 = arith.constant 0 : i32
    %c0_i32_1 = arith.constant 0 : i32
    return %c0_i32, %c0_i32_0 : i32, i32
  }
  func.func @transform_2(%arg0: i32) -> (i32, i32) {
    %c0_i32 = arith.constant 0 : i32
    %c0_i32_0 = arith.constant 0 : i32
    %c0_i32_1 = arith.constant 0 : i32
    return %c0_i32, %c0_i32_0 : i32, i32
  }
  func.func @transform_3(%arg0: i32) -> (i32, i32) {
    %c0_i32 = arith.constant 0 : i32
    %c0_i32_0 = arith.constant 0 : i32
    return %arg0, %c0_i32 : i32, i32
  }
}

</mosaic_0001>

<llo_original>
// kernel: tpu_custom_call.1
$region0: #{tpu_custom_call.1}
  #allocation0 [shape = 'u32[]', space=smem, size = 0x4, offset = 0x4, fixed_abs, tag = 'smem constant byte address 0x4 - core index']
  #allocation1 [shape = 'u32[72,128]{1,0:T(1,128)}', space=vmem, size = 0x9000, scoped, tag = 'internal scratch']
  %s0 = inlined_call_operand.vmem [shape: bf16[64,32], index: 0, kind: input, shape index: {}]
  %s1 = inlined_call_operand.vmem [shape: bf16[32,128], index: 1, kind: input, shape index: {}]
  %s2 = inlined_call_operand.vmem [shape: f32[1,128], index: 2, kind: input, shape index: {}]
  %s3 = inlined_call_operand.hbm [shape: bf16[64,128], index: 3, kind: output, shape index: {}]
  %s4 = sld [smem:[#allocation0]]
  $region22: #{tpu_custom_call.1} parent=0
    _
  %s6 = ssub.s32 1, %s4
  %s7 = scalar_select 0, %s6, %s4
  $region1: #{tpu_custom_call.1} parent=0
    #allocation2 [shape = 'u8[16384]{0}', space=vmem, size = 0x4000, scoped, tag = 'output window, operand 0, single buffered']
    #allocation3 [shape = 's32[1]{0}', space=sflag, size = 0x4, scoped, tag = 'scoped memory for tpu_custom_call.1']
    %8 = vsyncpa [#allocation3], 0
    // Predicated region
    $region2: #{tpu_custom_call.1} parent=1 // pred_check
      _
    $region3: #{tpu_custom_call.1} parent=1 // pred_check_branch
      %10 = sbr.rel (0) target = $region5
    $region4: #{tpu_custom_call.1} parent=1 // pred_region
      _
    $region5: #{tpu_custom_call.1} parent=1 // pred_fallthru
      _
    // Predicated region
    $region6: #{tpu_custom_call.1} parent=1 // pred_check
      _
    $region7: #{tpu_custom_call.1} parent=1 // pred_check_branch
      %12 = sbr.rel (0) target = $region9
    $region8: #{tpu_custom_call.1} parent=1 // pred_region
      _
    $region9: #{tpu_custom_call.1} parent=1 // pred_fallthru
      _
    // Predicated region
    $region10: #{tpu_custom_call.1} parent=1 // pred_check
      _
    $region11: #{tpu_custom_call.1} parent=1 // pred_check_branch
      %14 = sbr.rel (0) target = $region13
    $region12: #{tpu_custom_call.1} parent=1 // pred_region
      _
    $region13: #{tpu_custom_call.1} parent=1 // pred_fallthru
      _
    %v16 = vld [vmem:[%s0] sm:$0xf]
    %v17 = vld [vmem:[%s0 + $0x4] sm:$0xf]
    %v18 = vld [vmem:[%s0 + $0x8] sm:$0xf]
    %v19 = vld [vmem:[%s0 + $0xc] sm:$0xf]
    %v20 = vld [vmem:[%s0 + $0x10] sm:$0xf]
    %v21 = vld [vmem:[%s0 + $0x14] sm:$0xf]
    %v22 = vld [vmem:[%s0 + $0x18] sm:$0xf]
    %v23 = vld [vmem:[%s0 + $0x1c] sm:$0xf]
    %v24 = vld [vmem:[%s1] sm:$0xf]
    %v25 = vld [vmem:[%s1 + $0x4] sm:$0xf]
    %v26 = vld [vmem:[%s1 + $0x8] sm:$0xf]
    %v27 = vld [vmem:[%s1 + $0xc] sm:$0xf]
    %v28 = vld [vmem:[%s2] sm:$0x1]
    %v30 = vperm.slane %v28, 0
    %v40 = vunpack.c.l.b16 %v16
    %v41 = vunpack.c.l.b16 %v17
    %v42 = vunpack.c.l.b16 %v18
    %v43 = vunpack.c.l.b16 %v19
    %v44 = vunpack.c.l.b16 %v20
    %v45 = vunpack.c.l.b16 %v21
    %v46 = vunpack.c.l.b16 %v22
    %v47 = vunpack.c.l.b16 %v23
    %v48 = vpack.c.b16 %v41, %v40
    %v49 = vpack.c.b16 %v43, %v42
    %v50 = vpack.c.b16 %v45, %v44
    %v51 = vpack.c.b16 %v47, %v46
    %v56 = vunpack.c.l.b16 %v24
    %v57 = vunpack.c.l.b16 %v25
    %v58 = vunpack.c.l.b16 %v26
    %v59 = vunpack.c.l.b16 %v27
    %v60 = vpack.c.b16 %v57, %v56
    %v61 = vpack.c.b16 %v59, %v58
    %vm64 = vcmask 261120
    %v66 = vsel %vm64, %v48, 0
    %v69 = vsel %vm64, %v49, 0
    %v72 = vsel %vm64, %v50, 0
    %v75 = vsel %vm64, %v51, 0
    %77 = vmatpush.bf16.msra.mxu0 0
    %78 = vmatpush.bf16.msra.mxu0 0
    %79 = vmatpush.bf16.msra.mxu0 0
    %80 = vmatpush.bf16.msra.mxu0 0
    %81 = vmatpush.bf16.msra.mxu0 0
    %82 = vmatpush.bf16.msra.mxu0 0
    %83 = vmatpush.bf16.msra.mxu0 %v61
    %84 = vmatpush.bf16.msra.mxu0 %v60
    %85 = vmatmul.bf16.gmra.mxu0 %v66
    %v86 = vpop.f32.mrf.mxu0
    %v87 = vadd.f32 %v30, %v86
    %v88 = vpop.f32.mrf.mxu0
    %v89 = vadd.f32 %v30, %v88
    %90 = vmatmul.bf16.gmra.mxu0 %v69
    %v91 = vpop.f32.mrf.mxu0
    %v92 = vadd.f32 %v30, %v91
    %v93 = vpop.f32.mrf.mxu0
    %v94 = vadd.f32 %v30, %v93
    %95 = vmatmul.bf16.gmra.mxu0 %v72
    %v96 = vpop.f32.mrf.mxu0
    %v97 = vadd.f32 %v30, %v96
    %v98 = vpop.f32.mrf.mxu0
    %v99 = vadd.f32 %v30, %v98
    %100 = vmatmul.bf16.gmra.mxu0 %v75
    %v101 = vpop.f32.mrf.mxu0
    %v102 = vadd.f32 %v30, %v101
    %v103 = vpop.f32.mrf.mxu0
    %v104 = vadd.f32 %v30, %v103
    %105 = vdwg.mxu0
    %v106 = vpack.c.bf16 %v87, %v87
    %v107 = vpack.c.bf16 %v89, %v89
    %v108 = vpack.c.bf16 %v92, %v92
    %v109 = vpack.c.bf16 %v94, %v94
    %v110 = vpack.c.bf16 %v97, %v97
    %v111 = vpack.c.bf16 %v99, %v99
    %v112 = vpack.c.bf16 %v102, %v102
    %v113 = vpack.c.bf16 %v104, %v104
    %114 = vst [vmem:[#allocation2] sm:$0xf] %v106
    %115 = vst [vmem:[#allocation2 + $0x4] sm:$0xf] %v107
    %116 = vst [vmem:[#allocation2 + $0x8] sm:$0xf] %v108
    %117 = vst [vmem:[#allocation2 + $0xc] sm:$0xf] %v109
    %118 = vst [vmem:[#allocation2 + $0x10] sm:$0xf] %v110
    %119 = vst [vmem:[#allocation2 + $0x14] sm:$0xf] %v111
    %120 = vst [vmem:[#allocation2 + $0x18] sm:$0xf] %v112
    %121 = vst [vmem:[#allocation2 + $0x1c] sm:$0xf] %v113
    // Predicated region
    $region14: #{tpu_custom_call.1} parent=1 // pred_check
      _
    $region15: #{tpu_custom_call.1} parent=1 // pred_check_branch
      %123 = sbr.rel (0) target = $region17
    $region16: #{tpu_custom_call.1} parent=1 // pred_region
      %125 = vsyncadd [#allocation3], 0
      %s126 = sshll.u32 [#allocation2], 4
      %s127 = int_to_ptr.vmem [resolvable:$true] %s126
      %s128 = sshll.u32 %s3, 4
      %s129 = int_to_ptr.hbm [resolvable:$true] %s128
      %134 = dma.vmem_to_hbm [thread:$0]  %s127, 512, %s129, [#allocation3], 64, 64, 4
    $region17: #{tpu_custom_call.1} parent=1 // pred_fallthru
      _
    // Predicated region
    $region18: #{tpu_custom_call.1} parent=1 // pred_check
      _
    $region19: #{tpu_custom_call.1} parent=1 // pred_check_branch
      %136 = sbr.rel (0) target = $region21
    $region20: #{tpu_custom_call.1} parent=1 // pred_region
      %138 = dma.done [#allocation3], 512
    $region21: #{tpu_custom_call.1} parent=1 // pred_fallthru
      _
    %139 = vsyncpa [#allocation3], 1

</llo_original>
